<compile_context>
chip_gen: v6e
topology: v6e:2x2x1
jax: 0.10.0
libtpu: 0.0.40
codegen_flags: <defaults>
</compile_context>

<pallas_src>
import functools

import jax
import jax.numpy as jnp
from jax.experimental import pallas as pl
from jax.experimental.pallas import tpu as pltpu


def _rmsnorm_kernel(x_ref, w_ref, o_ref, *, eps: float, inv_d: float):
    # torch: x.to(float32); variance = mean(x^2, -1, keepdim=True)
    x = x_ref[...].astype(jnp.float32)
    variance = jnp.sum(x * x, axis=-1, keepdims=True) * inv_d
    normed = x * jax.lax.rsqrt(variance + eps)
    # torch: out = w * x.to(input_dtype) — cast back once, multiply in the
    # promoted dtype of (w, input), store.
    normed_cast = normed.astype(x_ref.dtype)
    o_ref[...] = (w_ref[...] * normed_cast).astype(o_ref.dtype)


def _vmem_capacity_bytes() -> int:
    """Physical per-core VMEM; conservative (v7x) fallback if unqueryable."""
    try:
        info = pltpu.get_tpu_info()
        cap = getattr(info, "vmem_capacity_bytes", None)
        if cap:
            return int(cap)
    except Exception:
        pass
    return 64 * 1024 * 1024


def rmsnorm(
    x: jax.Array,
    w: jax.Array,
    eps: float = 1e-5,
    block_rows: int | None = None,
    target_tile_bytes: int | None = None,  # combined (in + out) bytes per tile
) -> jax.Array:
    """RMSNorm over the last axis of x, scaled by w (shape [d_model])."""
    orig_shape = x.shape
    d_model = orig_shape[-1]
    assert w.shape == (d_model,)

    out_dtype = jnp.result_type(x.dtype, w.dtype)  # torch: w * x.to(input_dtype)

    x2d = x.reshape(-1, d_model)
    rows = x2d.shape[0]
    w2d = w.reshape(1, d_model)

    in_itemsize = jnp.dtype(x.dtype).itemsize
    out_itemsize = jnp.dtype(out_dtype).itemsize
    w_itemsize = jnp.dtype(w.dtype).itemsize
    # Sublane pack of the input dtype: 8 for 4B, 16 for 2B, 32 for 1B.
    sublane = max(8, 32 // in_itemsize)

    vmem_cap = _vmem_capacity_bytes()
    if target_tile_bytes is None:
        # 128-MiB-VMEM chips (v5e/v6e): go big; 64-MiB chips (v7x): stay ~3 MiB.
        target_tile_bytes = (6 << 20) if vmem_cap >= (100 << 20) else (3 << 20)

    rows_ceil = ((rows + sublane - 1) // sublane) * sublane

    # Byte-based row-tile sizing (no fixed row cap), accounting for both the
    # input and the (possibly promoted) output tile.
    if block_rows is None:
        bytes_per_row = max(1, d_model * (in_itemsize + out_itemsize))
        br = target_tile_bytes // bytes_per_row
        block_rows = max(sublane, (br // sublane) * sublane)
    block_rows = max(sublane, (block_rows // sublane) * sublane)

    # Keep >= 8 grid steps when the input is big enough: shards across both
    # v7x TensorCores and gives the software pipeline room to overlap.
    min_steps = 8
    if rows >= min_steps * sublane:
        cap = max(sublane, ((rows // min_steps) // sublane) * sublane)
        block_rows = min(block_rows, cap)
    block_rows = min(block_rows, rows_ceil)

    # Ragged last block: no padding, no post-slice. OOB reads are row-local
    # garbage (dropped on store), so valid rows are never contaminated.
    grid = (pl.cdiv(rows, block_rows),)

    # VMEM budget from actual usage: double-buffered in/out tiles, the weight
    # row, ~4 f32-tile-sized intermediates inside the body, plus headroom.
    in_tile = block_rows * d_model * in_itemsize
    out_tile = block_rows * d_model * out_itemsize
    f32_tile = block_rows * d_model * 4
    needed = 2 * (in_tile + out_tile) + 2 * d_model * w_itemsize + 4 * f32_tile
    needed += 2 << 20  # headroom for compiler-internal scratch
    vmem_limit = int(min(max(needed, 32 << 20), int(vmem_cap * 0.9)))

    cost = pl.CostEstimate(
        flops=4 * rows * d_model,
        transcendentals=rows,
        bytes_accessed=rows * d_model * (in_itemsize + out_itemsize)
        + d_model * w_itemsize,
    )

    out = pl.pallas_call(
        functools.partial(_rmsnorm_kernel, eps=float(eps), inv_d=1.0 / d_model),
        out_shape=jax.ShapeDtypeStruct((rows, d_model), out_dtype),
        grid_spec=pltpu.PrefetchScalarGridSpec(
            num_scalar_prefetch=0,
            grid=grid,
            in_specs=[
                # x row tile; last dim is the full d_model (always legal).
                pl.BlockSpec((block_rows, d_model), lambda i: (i, 0)),
                # w, broadcast to every grid step (stays resident in VMEM).
                pl.BlockSpec((1, d_model), lambda i: (0, 0)),
            ],
            out_specs=pl.BlockSpec((block_rows, d_model), lambda i: (i, 0)),
        ),
        compiler_params=pltpu.CompilerParams(
            dimension_semantics=("parallel",),  # row tiles shard across TCs
            vmem_limit_bytes=vmem_limit,
        ),
        cost_estimate=cost,
    )(x2d, w2d)

    return out.reshape(orig_shape)


if __name__ == "__main__":
    # Small shapes consistent with the module: [batch, seq, d_model]
    batch, seq, d_model = 2, 8, 32
    eps = 1e-5

    key = jax.random.PRNGKey(0)
    kx, _ = jax.random.split(key)
    x = jax.random.normal(kx, (batch, seq, d_model), dtype=jnp.float32)
    # torch initializes w = ones(d_model).
    w = jnp.ones((d_model,), dtype=jnp.float32)

    out = rmsnorm(x, w, eps=eps)
    out = jax.block_until_ready(out)

    # Reference check in plain JAX (same semantics as the torch forward).
    xf = x.astype(jnp.float32)
    var = jnp.mean(xf * xf, axis=-1, keepdims=True)
    ref = w * (xf * jax.lax.rsqrt(var + eps)).astype(x.dtype)
    assert out.shape == x.shape
    assert out.dtype == jnp.result_type(x.dtype, w.dtype)
    assert jnp.allclose(out, ref, atol=1e-5, rtol=1e-5)

    print("KERNEL_OK")
</pallas_src>

<mosaic_0001>
module attributes {stable_mosaic.version = 11 : i64} {
  func.func @_rmsnorm_kernel(%arg0: i32, %arg1: memref<16x32xf32, #tpu.memory_space<vmem>>, %arg2: memref<1x32xf32, #tpu.memory_space<vmem>>, %arg3: memref<16x32xf32, #tpu.memory_space<vmem>>) attributes {dimension_semantics = [#tpu.dimension_semantics<parallel>], iteration_bounds = array<i64: 1>, scalar_prefetch = 0 : i64, scratch_operands = 0 : i64, tpu.core_type = #tpu.core_type<tc>, window_params = [{transform_indices = @transform_0, window_bounds = array<i64: 16, 32>}, {pipeline_mode = #tpu.pipeline_mode<synchronous>, transform_indices = @transform_1, window_bounds = array<i64: 1, 32>}, {transform_indices = @transform_2, window_bounds = array<i64: 16, 32>}]} {
    %c0 = arith.constant 0 : index
    %c0_0 = arith.constant 0 : index
    %0 = vector.load %arg1[%c0, %c0_0] : memref<16x32xf32, #tpu.memory_space<vmem>>, vector<16x32xf32>
    %1 = arith.mulf %0, %0 : vector<16x32xf32>
    %cst = arith.constant dense<0.000000e+00> : vector<16xf32>
    %2 = vector.multi_reduction <add>, %1, %cst [1] : vector<16x32xf32> to vector<16xf32>
    %3 = vector.shape_cast %2 : vector<16xf32> to vector<16x1xf32>
    %cst_1 = arith.constant 3.125000e-02 : f32
    %4 = vector.broadcast %cst_1 : f32 to vector<16x1xf32>
    %5 = arith.mulf %3, %4 : vector<16x1xf32>
    %cst_2 = arith.constant 9.99999974E-6 : f32
    %6 = vector.broadcast %cst_2 : f32 to vector<16x1xf32>
    %7 = arith.addf %5, %6 : vector<16x1xf32>
    %8 = math.rsqrt %7 : vector<16x1xf32>
    %9 = vector.broadcast %8 : vector<16x1xf32> to vector<16x32xf32>
    %10 = arith.mulf %0, %9 : vector<16x32xf32>
    %c0_3 = arith.constant 0 : index
    %c0_4 = arith.constant 0 : index
    %11 = vector.load %arg2[%c0_3, %c0_4] : memref<1x32xf32, #tpu.memory_space<vmem>>, vector<1x32xf32>
    %12 = vector.broadcast %11 : vector<1x32xf32> to vector<16x32xf32>
    %13 = arith.mulf %12, %10 : vector<16x32xf32>
    %c0_5 = arith.constant 0 : index
    %c0_6 = arith.constant 0 : index
    %14 = vector.load %arg3[%c0_5, %c0_6] : memref<16x32xf32, #tpu.memory_space<vmem>>, vector<16x32xf32>
    tpu.vector_store %arg3[%c0_5, %c0_6], %13 {strides = array<i32>} : memref<16x32xf32, #tpu.memory_space<vmem>>, vector<16x32xf32>,
    return
  }
  func.func @transform_0(%arg0: i32) -> (i32, i32) {
    %c0_i32 = arith.constant 0 : i32
    %c0_i32_0 = arith.constant 0 : i32
    return %arg0, %c0_i32 : i32, i32
  }
  func.func @transform_1(%arg0: i32) -> (i32, i32) {
    %c0_i32 = arith.constant 0 : i32
    %c0_i32_0 = arith.constant 0 : i32
    %c0_i32_1 = arith.constant 0 : i32
    return %c0_i32, %c0_i32_0 : i32, i32
  }
  func.func @transform_2(%arg0: i32) -> (i32, i32) {
    %c0_i32 = arith.constant 0 : i32
    %c0_i32_0 = arith.constant 0 : i32
    return %arg0, %c0_i32 : i32, i32
  }
}

</mosaic_0001>

<llo_original>
// kernel: tpu_custom_call.1
$region0: #{tpu_custom_call.1}
  #allocation0 [shape = 'u32[]', space=smem, size = 0x4, offset = 0x4, fixed_abs, tag = 'smem constant byte address 0x4 - core index']
  #allocation1 [shape = 'u32[144,128]{1,0:T(1,128)}', space=vmem, size = 0x12000, scoped, tag = 'internal scratch']
  %s0 = inlined_call_operand.hbm [shape: f32[16,32], index: 0, kind: input, shape index: {}]
  %s1 = inlined_call_operand.vmem [shape: f32[1,32], index: 1, kind: input, shape index: {}]
  %s2 = inlined_call_operand.hbm [shape: f32[16,32], index: 2, kind: output, shape index: {}]
  %s3 = sld [smem:[#allocation0]]
  $region22: #{tpu_custom_call.1} parent=0
    _
  %s5 = ssub.s32 1, %s3
  %s6 = scalar_select 0, %s5, %s3
  $region1: #{tpu_custom_call.1} parent=0
    #allocation2 [shape = 'u8[8192]{0}', space=vmem, size = 0x2000, scoped, tag = 'input window, operand 0, single buffered']
    #allocation3 [shape = 's32[1]{0}', space=sflag, size = 0x4, scoped, tag = 'scoped memory for tpu_custom_call.1']
    #allocation4 [shape = 's32[1]{0}', space=sflag, size = 0x4, scoped, tag = 'scoped memory for tpu_custom_call.1']
    #allocation5 [shape = 'u8[8192]{0}', space=vmem, size = 0x2000, scoped, tag = 'output window, operand 0, single buffered']
    %7 = vsyncpa [#allocation3], 0
    %8 = vsyncpa [#allocation4], 0
    // Predicated region
    $region2: #{tpu_custom_call.1} parent=1 // pred_check
      _
    $region3: #{tpu_custom_call.1} parent=1 // pred_check_branch
      %10 = sbr.rel (0) target = $region5
    $region4: #{tpu_custom_call.1} parent=1 // pred_region
      %s12 = ssub.s32 256, 256
      %13 = vsyncadd [#allocation3], %s12
      %s14 = sshll.u32 [#allocation2], 4
      %s15 = int_to_ptr.vmem [resolvable:$true] %s14
      %20 = dma.hbm_to_vmem [thread:$0]  %s0, 256, %s15, [#allocation3], 128, 128, 8
    $region5: #{tpu_custom_call.1} parent=1 // pred_fallthru
      _
    // Predicated region
    $region6: #{tpu_custom_call.1} parent=1 // pred_check
      _
    $region7: #{tpu_custom_call.1} parent=1 // pred_check_branch
      %22 = sbr.rel (0) target = $region9
    $region8: #{tpu_custom_call.1} parent=1 // pred_region
      _
    $region9: #{tpu_custom_call.1} parent=1 // pred_fallthru
      _
    // Predicated region
    $region10: #{tpu_custom_call.1} parent=1 // pred_check
      _
    $region11: #{tpu_custom_call.1} parent=1 // pred_check_branch
      %24 = sbr.rel (0) target = $region13
    $region12: #{tpu_custom_call.1} parent=1 // pred_region
      %25 = dma.done [#allocation3], 256
    $region13: #{tpu_custom_call.1} parent=1 // pred_fallthru
      _
    %v26 = vld [vmem:[#allocation2] sm:$0xff]
    %v27 = vld [vmem:[#allocation2 + $0x8] sm:$0xff]
    %v28 = vmul.f32 %v26, %v26
    %v29 = vmul.f32 %v27, %v27
    %vm30 = vcmask 261120
    %v31 = vsel %vm30, %v28, 0.0
    %32 = vadd.xlane.f32.xlu0 %v31
    %v33 = vpop.xlane.xlu0 %32
    %v34 = vsel %vm30, %v29, 0.0
    %35 = vadd.xlane.f32.xlu0 %v34
    %v36 = vpop.xlane.xlu0 %35
    %v37 = vmul.f32 %v33, 0.03125
    %v38 = vmul.f32 %v36, 0.03125
    %v39 = vadd.f32 %v37, 1e-05
    %v40 = vadd.f32 %v38, 1e-05
    %v41 = vrsqrt.pop %v39
    %v42 = vrsqrt.pop %v40
    %v43 = vmul.f32 %v26, %v41
    %v44 = vmul.f32 %v27, %v42
    %v45 = vld [vmem:[%s1] sm:$0x1]
    %v47 = vlaneseq
    %v48 = vshrl.u32 %v47, 7
    %v49 = vsub.s32 0, %v48
    %v50 = vrot.slane %v45, %v49
    %v52 = vmul.f32 %v50, %v43
    %v53 = vmul.f32 %v50, %v44
    %54 = vst.msk [vmem:[#allocation5] sm:$0xff] %vm30, %v52
    %55 = vst.msk [vmem:[#allocation5 + $0x8] sm:$0xff] %vm30, %v53
    // Predicated region
    $region14: #{tpu_custom_call.1} parent=1 // pred_check
      _
    $region15: #{tpu_custom_call.1} parent=1 // pred_check_branch
      %57 = sbr.rel (0) target = $region17
    $region16: #{tpu_custom_call.1} parent=1 // pred_region
      %s59 = ssub.s32 256, 256
      %60 = vsyncadd [#allocation4], %s59
      %s61 = sshll.u32 [#allocation5], 4
      %s62 = int_to_ptr.vmem [resolvable:$true] %s61
      %67 = dma.vmem_to_hbm [thread:$0]  %s62, 256, %s2, [#allocation4], 128, 128, 8
    $region17: #{tpu_custom_call.1} parent=1 // pred_fallthru
      _
    // Predicated region
    $region18: #{tpu_custom_call.1} parent=1 // pred_check
      _
    $region19: #{tpu_custom_call.1} parent=1 // pred_check_branch
      %69 = sbr.rel (0) target = $region21
    $region20: #{tpu_custom_call.1} parent=1 // pred_region
      %70 = dma.done [#allocation4], 256
    $region21: #{tpu_custom_call.1} parent=1 // pred_fallthru
      _
    %71 = vsyncpa [#allocation3], 1
    %72 = vsyncpa [#allocation4], 1

</llo_original>
